<compile_context>
chip_gen: v7x
topology: tpu7x:2x2x1
jax: 0.10.0
libtpu: 0.0.40
codegen_flags: <defaults>
</compile_context>

<pallas_src>
import jax
import jax.numpy as jnp
from jax import lax
from jax.experimental import pallas as pl
from jax.experimental.pallas import tpu as pltpu


def _clip_kl_kernel(m_ref, x_ref, t_ref, out_ref):
    """One grid step processes a (B, N, TK) tile; writes (1, 1, TK) per-lane partials."""
    p = x_ref[...].astype(jnp.float32)          # (B, N, TK)
    q = t_ref[...].astype(jnp.float32)          # (B, N, TK)
    m = m_ref[...]                              # (1, TK) int32 prefix lengths (per lane)
    bdim, ndim, kdim = p.shape

    row = lax.broadcasted_iota(jnp.int32, (bdim, ndim, kdim), 1)   # index along N
    valid = row < m                              # (1,TK) broadcasts over B and N
    neg = jnp.float32(-1e30)

    # masked log_softmax(p) along the N axis
    p_m = jnp.where(valid, p, neg)
    p_max = jnp.max(p_m, axis=1, keepdims=True)
    p_sh = p_m - p_max
    p_sum = jnp.sum(jnp.exp(p_sh), axis=1, keepdims=True)   # masked pos: exp underflows to 0
    logp = p_sh - jnp.log(p_sum)

    # masked softmax(q) / log_softmax(q) along the N axis
    q_m = jnp.where(valid, q, neg)
    q_max = jnp.max(q_m, axis=1, keepdims=True)
    q_sh = q_m - q_max
    q_exp = jnp.exp(q_sh)                                    # masked pos: exactly 0
    q_sum = jnp.sum(q_exp, axis=1, keepdims=True)
    logq = q_sh - jnp.log(q_sum)
    py = q_exp * (1.0 / q_sum)       # exact divide on the small (B,1,TK) tensor
    # (pl.reciprocal(approx=True) would be ~free here but costs ~1e-3 rel. error;
    #  the kernel is DMA-bound so we keep the exact path.)

    # F.kl_div(logp, py, reduction='sum'): zero where target <= 0.
    # py == 0 at every masked position and fully-masked / padded lanes cancel exactly.
    term = jnp.where(py > 0, py * (logq - logp), 0.0)

    # lane-dense per-K partial sums: reduce over B (elementwise adds) and N (sublanes)
    partial = jnp.sum(term, axis=0, keepdims=True)           # (1, N, TK)
    partial = jnp.sum(partial, axis=1, keepdims=True)        # (1, 1, TK)
    out_ref[...] = partial


def _choose_tk(B, N, K, itemsize):
    """Pick the K-axis (lane) tile: multiple of 128 when possible, full K otherwise."""
    if K % 128 == 0:
        tk = 128
        # grow while it still divides K and the per-input block stays ~<=1 MiB
        while (tk * 2 <= 512) and (K % (tk * 2) == 0) and (B * N * (tk * 2) * itemsize <= (1 << 20)):
            tk *= 2
        return tk
    if K > 128:
        return 128          # partial edge block; padded lanes are masked via zero-padded m
    return K                # small K: a single full-extent block


def clip_kl_pallas(x, target, mask, _=None):
    """x, target: (B, N, K); mask: (K, N). Returns scalar float32 loss."""
    B, N, K = x.shape
    assert target.shape == (B, N, K)
    assert mask.shape == (K, N)

    # prefix length per index (== torch.nonzero(mask[index] > 0).shape[0])
    m = jnp.sum(mask > 0, axis=1).astype(jnp.int32)               # (K,)

    tk = _choose_tk(B, N, K, jnp.dtype(x.dtype).itemsize)
    grid = pl.cdiv(K, tk)
    kp = grid * tk

    # pad m with zeros so out-of-range / garbage-padded lanes contribute exactly 0
    m2 = jnp.zeros((1, kp), jnp.int32).at[0, :K].set(m)

    partials = pl.pallas_call(
        _clip_kl_kernel,
        out_shape=jax.ShapeDtypeStruct((grid, 1, tk), jnp.float32),
        grid_spec=pltpu.PrefetchScalarGridSpec(
            num_scalar_prefetch=0,
            grid=(grid,),
            in_specs=[
                pl.BlockSpec((1, tk), lambda kb: (0, kb)),          # m (prefix lengths)
                pl.BlockSpec((B, N, tk), lambda kb: (0, 0, kb)),    # x, native layout
                pl.BlockSpec((B, N, tk), lambda kb: (0, 0, kb)),    # target, native layout
            ],
            out_specs=pl.BlockSpec((1, 1, tk), lambda kb: (kb, 0, 0)),
        ),
        compiler_params=pltpu.CompilerParams(
            dimension_semantics=("parallel",),        # independent blocks -> megacore-friendly
            vmem_limit_bytes=32 * 1024 * 1024,        # safe on v5e/v6e/v7x for <=1 MiB blocks
        ),
    )(m2, x, target)

    return jnp.sum(partials) / B


def clip_kl_reference(x, target, mask):
    """Pure-JAX reference mirroring the PyTorch loop exactly."""
    B, N, K = x.shape
    loss = jnp.float32(0.0)
    for k in range(K):
        mm = int(jnp.sum(mask[k] > 0))
        if mm == 0:
            continue
        p = x[:, :mm, k].astype(jnp.float32)
        q = target[:, :mm, k].astype(jnp.float32)
        logp = jax.nn.log_softmax(p, axis=-1)
        py = jax.nn.softmax(q, axis=-1)
        loss = loss + jnp.sum(py * (jnp.log(py) - logp))
    return loss / B


if __name__ == "__main__":
    key = jax.random.PRNGKey(0)
    kx, kt, km = jax.random.split(key, 3)

    B, N, K = 2, 16, 8
    x = jax.random.normal(kx, (B, N, K), dtype=jnp.float32)
    target = jax.random.normal(kt, (B, N, K), dtype=jnp.float32)
    # mask values in [-1, 1]; positives define the per-index prefix length m
    mask = jax.random.uniform(km, (K, N), dtype=jnp.float32, minval=-1.0, maxval=1.0)

    loss = clip_kl_pallas(x, target, mask, None)
    jax.block_until_ready(loss)

    ref = clip_kl_reference(x, target, mask)
    assert jnp.isfinite(loss), "non-finite loss"
    assert jnp.allclose(loss, ref, rtol=1e-4, atol=1e-5), (loss, ref)

    print("KERNEL_OK")
</pallas_src>

<mosaic_0001>
module attributes {stable_mosaic.version = 11 : i64} {
  func.func @_clip_kl_kernel(%arg0: i32, %arg1: memref<1x8xi32, #tpu.memory_space<vmem>>, %arg2: memref<2x16x8xf32, #tpu.memory_space<vmem>>, %arg3: memref<2x16x8xf32, #tpu.memory_space<vmem>>, %arg4: memref<1x1x8xf32, #tpu.memory_space<vmem>>) attributes {dimension_semantics = [#tpu.dimension_semantics<parallel>], iteration_bounds = array<i64: 1>, scalar_prefetch = 0 : i64, scratch_operands = 0 : i64, tpu.core_type = #tpu.core_type<tc>, window_params = [{transform_indices = @transform_0, window_bounds = array<i64: 1, 8>}, {transform_indices = @transform_1, window_bounds = array<i64: 2, 16, 8>}, {transform_indices = @transform_2, window_bounds = array<i64: 2, 16, 8>}, {transform_indices = @transform_3, window_bounds = array<i64: 1, 1, 8>}]} {
    %c0 = arith.constant 0 : index
    %c0_0 = arith.constant 0 : index
    %c0_1 = arith.constant 0 : index
    %0 = vector.load %arg2[%c0, %c0_0, %c0_1] : memref<2x16x8xf32, #tpu.memory_space<vmem>>, vector<2x16x8xf32>
    %c0_2 = arith.constant 0 : index
    %c0_3 = arith.constant 0 : index
    %c0_4 = arith.constant 0 : index
    %1 = vector.load %arg3[%c0_2, %c0_3, %c0_4] : memref<2x16x8xf32, #tpu.memory_space<vmem>>, vector<2x16x8xf32>
    %c0_5 = arith.constant 0 : index
    %c0_6 = arith.constant 0 : index
    %2 = vector.load %arg1[%c0_5, %c0_6] : memref<1x8xi32, #tpu.memory_space<vmem>>, vector<1x8xi32>
    %3 = tpu.iota {dimensions = array<i32: 1>} : vector<2x16x8xi32>
    %4 = vector.shape_cast %2 : vector<1x8xi32> to vector<1x1x8xi32>
    %5 = vector.broadcast %4 : vector<1x1x8xi32> to vector<2x16x8xi32>
    %6 = arith.cmpi slt, %3, %5 : vector<2x16x8xi32>
    %cst = arith.constant -1.000000e+30 : f32
    %7 = vector.broadcast %cst : f32 to vector<2x16x8xf32>
    %8 = arith.select %6, %0, %7 : vector<2x16x8xi1>, vector<2x16x8xf32>
    %cst_7 = arith.constant dense<0xFF800000> : vector<2x8xf32>
    %9 = vector.multi_reduction <maximumf>, %8, %cst_7 [1] : vector<2x16x8xf32> to vector<2x8xf32>
    %10 = vector.shape_cast %9 : vector<2x8xf32> to vector<2x1x8xf32>
    %11 = vector.broadcast %10 : vector<2x1x8xf32> to vector<2x16x8xf32>
    %12 = arith.subf %8, %11 : vector<2x16x8xf32>
    %13 = math.exp %12 : vector<2x16x8xf32>
    %cst_8 = arith.constant dense<0.000000e+00> : vector<2x8xf32>
    %14 = vector.multi_reduction <add>, %13, %cst_8 [1] : vector<2x16x8xf32> to vector<2x8xf32>
    %15 = vector.shape_cast %14 : vector<2x8xf32> to vector<2x1x8xf32>
    %16 = math.log %15 : vector<2x1x8xf32>
    %17 = vector.broadcast %16 : vector<2x1x8xf32> to vector<2x16x8xf32>
    %18 = arith.subf %12, %17 : vector<2x16x8xf32>
    %cst_9 = arith.constant -1.000000e+30 : f32
    %19 = vector.broadcast %cst_9 : f32 to vector<2x16x8xf32>
    %20 = arith.select %6, %1, %19 : vector<2x16x8xi1>, vector<2x16x8xf32>
    %cst_10 = arith.constant dense<0xFF800000> : vector<2x8xf32>
    %21 = vector.multi_reduction <maximumf>, %20, %cst_10 [1] : vector<2x16x8xf32> to vector<2x8xf32>
    %22 = vector.shape_cast %21 : vector<2x8xf32> to vector<2x1x8xf32>
    %23 = vector.broadcast %22 : vector<2x1x8xf32> to vector<2x16x8xf32>
    %24 = arith.subf %20, %23 : vector<2x16x8xf32>
    %25 = math.exp %24 : vector<2x16x8xf32>
    %cst_11 = arith.constant dense<0.000000e+00> : vector<2x8xf32>
    %26 = vector.multi_reduction <add>, %25, %cst_11 [1] : vector<2x16x8xf32> to vector<2x8xf32>
    %27 = vector.shape_cast %26 : vector<2x8xf32> to vector<2x1x8xf32>
    %28 = math.log %27 : vector<2x1x8xf32>
    %29 = vector.broadcast %28 : vector<2x1x8xf32> to vector<2x16x8xf32>
    %30 = arith.subf %24, %29 : vector<2x16x8xf32>
    %cst_12 = arith.constant 1.000000e+00 : f32
    %31 = vector.broadcast %cst_12 : f32 to vector<2x1x8xf32>
    %32 = arith.divf %31, %27 : vector<2x1x8xf32>
    %33 = vector.broadcast %32 : vector<2x1x8xf32> to vector<2x16x8xf32>
    %34 = arith.mulf %25, %33 : vector<2x16x8xf32>
    %cst_13 = arith.constant 0.000000e+00 : f32
    %35 = vector.broadcast %cst_13 : f32 to vector<2x16x8xf32>
    %36 = arith.cmpf ogt, %34, %35 : vector<2x16x8xf32>
    %37 = arith.subf %30, %18 : vector<2x16x8xf32>
    %38 = arith.mulf %34, %37 : vector<2x16x8xf32>
    %cst_14 = arith.constant 0.000000e+00 : f32
    %39 = vector.broadcast %cst_14 : f32 to vector<2x16x8xf32>
    %40 = arith.select %36, %38, %39 : vector<2x16x8xi1>, vector<2x16x8xf32>
    %cst_15 = arith.constant dense<0.000000e+00> : vector<16x8xf32>
    %41 = vector.multi_reduction <add>, %40, %cst_15 [0] : vector<2x16x8xf32> to vector<16x8xf32>
    %42 = vector.shape_cast %41 : vector<16x8xf32> to vector<1x16x8xf32>
    %cst_16 = arith.constant dense<0.000000e+00> : vector<1x8xf32>
    %43 = vector.multi_reduction <add>, %42, %cst_16 [1] : vector<1x16x8xf32> to vector<1x8xf32>
    %44 = vector.shape_cast %43 : vector<1x8xf32> to vector<1x1x8xf32>
    %c0_17 = arith.constant 0 : index
    %c0_18 = arith.constant 0 : index
    %c0_19 = arith.constant 0 : index
    %45 = vector.load %arg4[%c0_17, %c0_18, %c0_19] : memref<1x1x8xf32, #tpu.memory_space<vmem>>, vector<1x1x8xf32>
    tpu.vector_store %arg4[%c0_17, %c0_18, %c0_19], %44 {strides = array<i32>} : memref<1x1x8xf32, #tpu.memory_space<vmem>>, vector<1x1x8xf32>,
    return
  }
  func.func @transform_0(%arg0: i32) -> (i32, i32) {
    %c0_i32 = arith.constant 0 : i32
    %c0_i32_0 = arith.constant 0 : i32
    return %c0_i32, %arg0 : i32, i32
  }
  func.func @transform_1(%arg0: i32) -> (i32, i32, i32) {
    %c0_i32 = arith.constant 0 : i32
    %c0_i32_0 = arith.constant 0 : i32
    %c0_i32_1 = arith.constant 0 : i32
    return %c0_i32, %c0_i32_0, %arg0 : i32, i32, i32
  }
  func.func @transform_2(%arg0: i32) -> (i32, i32, i32) {
    %c0_i32 = arith.constant 0 : i32
    %c0_i32_0 = arith.constant 0 : i32
    %c0_i32_1 = arith.constant 0 : i32
    return %c0_i32, %c0_i32_0, %arg0 : i32, i32, i32
  }
  func.func @transform_3(%arg0: i32) -> (i32, i32, i32) {
    %c0_i32 = arith.constant 0 : i32
    %c0_i32_0 = arith.constant 0 : i32
    %c0_i32_1 = arith.constant 0 : i32
    return %arg0, %c0_i32, %c0_i32_0 : i32, i32, i32
  }
}

</mosaic_0001>

<llo_original>
// kernel: tpu_custom_call.1
$region0: #{tpu_custom_call.1}
  #allocation0 [shape = 'u32[]', space=smem, size = 0x4, offset = 0x4, fixed_abs, tag = 'smem constant byte address 0x4 - core index']
  #allocation1 [shape = 'u32[144,128]{1,0:T(1,128)}', space=vmem, size = 0x12000, scoped, tag = 'internal scratch']
  %s0 = inlined_call_operand.vmem [shape: s32[1,8], index: 0, kind: input, shape index: {}]
  %s1 = inlined_call_operand.vmem [shape: f32[2,16,8], index: 1, kind: input, shape index: {}]
  %s2 = inlined_call_operand.vmem [shape: f32[2,16,8], index: 2, kind: input, shape index: {}]
  %s3 = inlined_call_operand.hbm [shape: f32[1,1,8], index: 3, kind: output, shape index: {}]
  %s4 = sld [smem:[#allocation0]]
  $region22: #{tpu_custom_call.1} parent=0
    _
  %s6 = ssub.s32 1, %s4
  %s7 = scalar_select 0, %s6, %s4
  $region1: #{tpu_custom_call.1} parent=0
    #allocation2 [shape = 'u8[512]{0}', space=vmem, size = 0x400, scoped, tag = 'output window, operand 0, single buffered']
    #allocation3 [shape = 's32[1]{0}', space=sflag, size = 0x4, scoped, tag = 'scoped memory for tpu_custom_call.1']
    %8 = vsyncpa [#allocation3], 0
    // Predicated region
    $region2: #{tpu_custom_call.1} parent=1 // pred_check
      _
    $region3: #{tpu_custom_call.1} parent=1 // pred_check_branch
      %10 = sbr.rel (0) target = $region5
    $region4: #{tpu_custom_call.1} parent=1 // pred_region
      _
    $region5: #{tpu_custom_call.1} parent=1 // pred_fallthru
      _
    // Predicated region
    $region6: #{tpu_custom_call.1} parent=1 // pred_check
      _
    $region7: #{tpu_custom_call.1} parent=1 // pred_check_branch
      %12 = sbr.rel (0) target = $region9
    $region8: #{tpu_custom_call.1} parent=1 // pred_region
      _
    $region9: #{tpu_custom_call.1} parent=1 // pred_fallthru
      _
    // Predicated region
    $region10: #{tpu_custom_call.1} parent=1 // pred_check
      _
    $region11: #{tpu_custom_call.1} parent=1 // pred_check_branch
      %14 = sbr.rel (0) target = $region13
    $region12: #{tpu_custom_call.1} parent=1 // pred_region
      _
    $region13: #{tpu_custom_call.1} parent=1 // pred_fallthru
      _
    %v15 = vld [vmem:[%s1] sm:$0xff]
    %v16 = vld [vmem:[%s1 + $0x8] sm:$0xff]
    %v17 = vld [vmem:[%s1 + $0x10] sm:$0xff]
    %v18 = vld [vmem:[%s1 + $0x18] sm:$0xff]
    %v19 = vld [vmem:[%s2] sm:$0xff]
    %v20 = vld [vmem:[%s2 + $0x8] sm:$0xff]
    %v21 = vld [vmem:[%s2 + $0x10] sm:$0xff]
    %v22 = vld [vmem:[%s2 + $0x18] sm:$0xff]
    %v23 = vld [vmem:[%s0] sm:$0x1]
    %v24 = vlaneseq
    %v25 = vshrl.u32 %v24, 7
    %v26 = vadd.s32 %v25, 8
    %v27 = vlaneseq
    %v28 = vshrl.u32 %v27, 7
    %v29 = vsub.s32 0, %v28
    %v30 = vrot.slane %v23, %v29
    %vm31 = vcmp.lt.s32.totalorder %v25, %v30
    %vm32 = vcmp.lt.s32.totalorder %v26, %v30
    %v33 = vsel %vm31, %v15, -1e+30
    %v34 = vsel %vm32, %v16, -1e+30
    %v35 = vsel %vm31, %v17, -1e+30
    %v36 = vsel %vm32, %v18, -1e+30
    %vm37 = vcmask 64512
    %v38 = vsel %vm37, %v33, -inf
    %v39 = vsel %vm37, %v34, -inf
    %v40 = vmax.f32 %v38, %v39
    %v41 = vrot.slane %v40, 4
    %v42 = vmax.f32 %v40, %v41
    %v43 = vrot.slane %v42, 2
    %v44 = vmax.f32 %v42, %v43
    %v45 = vrot.slane %v44, 1
    %v46 = vmax.f32 %v44, %v45
    %v47 = vsel %vm37, %v35, -inf
    %v48 = vsel %vm37, %v36, -inf
    %v49 = vmax.f32 %v47, %v48
    %v50 = vrot.slane %v49, 4
    %v51 = vmax.f32 %v49, %v50
    %v52 = vrot.slane %v51, 2
    %v53 = vmax.f32 %v51, %v52
    %v54 = vrot.slane %v53, 1
    %v55 = vmax.f32 %v53, %v54
    %v56 = vsub.f32 %v33, %v46
    %v57 = vsub.f32 %v34, %v46
    %v58 = vsub.f32 %v35, %v55
    %v59 = vsub.f32 %v36, %v55
    %v60 = vmul.f32 %v56, 1.442695
    %v61 = vpow.pop %v60
    %v62 = vmul.f32 %v57, 1.442695
    %v63 = vpow.pop %v62
    %v64 = vmul.f32 %v58, 1.442695
    %v65 = vpow.pop %v64
    %v66 = vmul.f32 %v59, 1.442695
    %v67 = vpow.pop %v66
    %v68 = vsel %vm37, %v61, 0.0
    %v69 = vsel %vm37, %v63, 0.0
    %v70 = vadd.f32 %v68, %v69
    %v71 = vrot.slane %v70, 4
    %v72 = vadd.f32 %v70, %v71
    %v73 = vrot.slane %v72, 2
    %v74 = vadd.f32 %v72, %v73
    %v75 = vrot.slane %v74, 1
    %v76 = vadd.f32 %v74, %v75
    %v77 = vsel %vm37, %v65, 0.0
    %v78 = vsel %vm37, %v67, 0.0
    %v79 = vadd.f32 %v77, %v78
    %v80 = vrot.slane %v79, 4
    %v81 = vadd.f32 %v79, %v80
    %v82 = vrot.slane %v81, 2
    %v83 = vadd.f32 %v81, %v82
    %v84 = vrot.slane %v83, 1
    %v85 = vadd.f32 %v83, %v84
    %v86 = vlog2.pop %v76
    %v87 = vmul.f32 %v86, 0.6931472
    %v88 = vlog2.pop %v85
    %v89 = vmul.f32 %v88, 0.6931472
    %v90 = vsub.f32 %v56, %v87
    %v91 = vsub.f32 %v57, %v87
    %v92 = vsub.f32 %v58, %v89
    %v93 = vsub.f32 %v59, %v89
    %v94 = vsel %vm31, %v19, -1e+30
    %v95 = vsel %vm32, %v20, -1e+30
    %v96 = vsel %vm31, %v21, -1e+30
    %v97 = vsel %vm32, %v22, -1e+30
    %v98 = vsel %vm37, %v94, -inf
    %v99 = vsel %vm37, %v95, -inf
    %v100 = vmax.f32 %v98, %v99
    %v101 = vrot.slane %v100, 4
    %v102 = vmax.f32 %v100, %v101
    %v103 = vrot.slane %v102, 2
    %v104 = vmax.f32 %v102, %v103
    %v105 = vrot.slane %v104, 1
    %v106 = vmax.f32 %v104, %v105
    %v107 = vsel %vm37, %v96, -inf
    %v108 = vsel %vm37, %v97, -inf
    %v109 = vmax.f32 %v107, %v108
    %v110 = vrot.slane %v109, 4
    %v111 = vmax.f32 %v109, %v110
    %v112 = vrot.slane %v111, 2
    %v113 = vmax.f32 %v111, %v112
    %v114 = vrot.slane %v113, 1
    %v115 = vmax.f32 %v113, %v114
    %v116 = vsub.f32 %v94, %v106
    %v117 = vsub.f32 %v95, %v106
    %v118 = vsub.f32 %v96, %v115
    %v119 = vsub.f32 %v97, %v115
    %v120 = vmul.f32 %v116, 1.442695
    %v121 = vpow.pop %v120
    %v122 = vmul.f32 %v117, 1.442695
    %v123 = vpow.pop %v122
    %v124 = vmul.f32 %v118, 1.442695
    %v125 = vpow.pop %v124
    %v126 = vmul.f32 %v119, 1.442695
    %v127 = vpow.pop %v126
    %v128 = vsel %vm37, %v121, 0.0
    %v129 = vsel %vm37, %v123, 0.0
    %v130 = vadd.f32 %v128, %v129
    %v131 = vrot.slane %v130, 4
    %v132 = vadd.f32 %v130, %v131
    %v133 = vrot.slane %v132, 2
    %v134 = vadd.f32 %v132, %v133
    %v135 = vrot.slane %v134, 1
    %v136 = vadd.f32 %v134, %v135
    %v137 = vsel %vm37, %v125, 0.0
    %v138 = vsel %vm37, %v127, 0.0
    %v139 = vadd.f32 %v137, %v138
    %v140 = vrot.slane %v139, 4
    %v141 = vadd.f32 %v139, %v140
    %v142 = vrot.slane %v141, 2
    %v143 = vadd.f32 %v141, %v142
    %v144 = vrot.slane %v143, 1
    %v145 = vadd.f32 %v143, %v144
    %v146 = vlog2.pop %v136
    %v147 = vmul.f32 %v146, 0.6931472
    %v148 = vlog2.pop %v145
    %v149 = vmul.f32 %v148, 0.6931472
    %v150 = vsub.f32 %v116, %v147
    %v151 = vsub.f32 %v117, %v147
    %v152 = vsub.f32 %v118, %v149
    %v153 = vsub.f32 %v119, %v149
    %v154 = vrcp.pop %v136
    %v155 = vmul.f32 1.0, %v154
    %v156 = vrcp.pop %v145
    %v157 = vmul.f32 1.0, %v156
    %v158 = vmul.f32 %v121, %v155
    %v159 = vmul.f32 %v123, %v155
    %v160 = vmul.f32 %v125, %v157
    %v161 = vmul.f32 %v127, %v157
    %vm162 = vcmp.gt.f32.partialorder %v158, 0.0
    %vm163 = vcmp.gt.f32.partialorder %v159, 0.0
    %vm164 = vcmp.gt.f32.partialorder %v160, 0.0
    %vm165 = vcmp.gt.f32.partialorder %v161, 0.0
    %v166 = vsub.f32 %v150, %v90
    %v167 = vsub.f32 %v151, %v91
    %v168 = vsub.f32 %v152, %v92
    %v169 = vsub.f32 %v153, %v93
    %v170 = vmul.f32 %v158, %v166
    %v171 = vmul.f32 %v159, %v167
    %v172 = vmul.f32 %v160, %v168
    %v173 = vmul.f32 %v161, %v169
    %v174 = vsel %vm162, %v170, 0.0
    %v175 = vsel %vm163, %v171, 0.0
    %v176 = vsel %vm164, %v172, 0.0
    %v177 = vsel %vm165, %v173, 0.0
    %v178 = vsel %vm37, %v174, 0.0
    %v179 = vsel %vm37, %v176, 0.0
    %v180 = vadd.f32 %v178, %v179
    %v181 = vsel %vm37, %v175, 0.0
    %v182 = vsel %vm37, %v177, 0.0
    %v183 = vadd.f32 %v181, %v182
    %v184 = vsel %vm37, %v180, 0.0
    %v185 = vsel %vm37, %v183, 0.0
    %v186 = vadd.f32 %v184, %v185
    %v187 = vrot.slane %v186, 4
    %v188 = vadd.f32 %v186, %v187
    %v189 = vrot.slane %v188, 2
    %v190 = vadd.f32 %v188, %v189
    %v191 = vrot.slane %v190, 1
    %v192 = vadd.f32 %v190, %v191
    %vm193 = vcmask 57344
    %194 = vst.msk [vmem:[#allocation2] sm:$0x1] %vm193, %v192
    // Predicated region
    $region14: #{tpu_custom_call.1} parent=1 // pred_check
      _
    $region15: #{tpu_custom_call.1} parent=1 // pred_check_branch
      %196 = sbr.rel (0) target = $region17
    $region16: #{tpu_custom_call.1} parent=1 // pred_region
      %s198 = ssub.s32 16, 16
      %199 = vsyncadd [#allocation3], %s198
      %s201 = sshll.u32 [#allocation2], 4
      %s202 = int_to_ptr.vmem [resolvable:$true] %s201
      %204 = dma.vmem_to_hbm [thread:$0]  %s202, 16, %s3, [#allocation3]
    $region17: #{tpu_custom_call.1} parent=1 // pred_fallthru
      _
    // Predicated region
    $region18: #{tpu_custom_call.1} parent=1 // pred_check
      _
    $region19: #{tpu_custom_call.1} parent=1 // pred_check_branch
      %206 = sbr.rel (0) target = $region21
    $region20: #{tpu_custom_call.1} parent=1 // pred_region
      %207 = dma.done [#allocation3], 16
    $region21: #{tpu_custom_call.1} parent=1 // pred_fallthru
      _
    %208 = vsyncpa [#allocation3], 1

</llo_original>
